<compile_context>
chip_gen: v7x
topology: tpu7x:2x2x1
jax: 0.10.0
libtpu: 0.0.40
codegen_flags: <defaults>
</compile_context>

<pallas_src>
import numpy as np
import jax
import jax.numpy as jnp
from jax.experimental import pallas as pl
from jax.experimental.pallas import tpu as pltpu

# __init__ hyper-parameters (compile-time constants, like the nn.Module attrs)
ENFORCE_0_SNR = True
SNR_SCALE = 0.5


def _gamma(t):
    """Concrete cosine gamma schedule: cos(pi/2 * t)^2."""
    return jnp.cos(0.5 * jnp.pi * t) ** 2


# --- hoisted, data-independent constants, evaluated in float32 so they match
# --- the in-kernel f32 cos evaluation as closely as possible -----------------
def _gamma_np_f32(t):
    t = np.float32(t)
    return np.float32(np.cos(np.float32(0.5 * np.pi) * t) ** 2)


_GAMMA_0 = _gamma_np_f32(0.0)                  # exactly 1.0
_GAMMA_T = _gamma_np_f32(1.0)                  # ~1.9e-15 in f32
_SHIFT = _GAMMA_T
_SCALE = np.float32(_GAMMA_0 / (_GAMMA_0 - _GAMMA_T))
_S2 = float(SNR_SCALE) ** 2


def ddpm_schedule_kernel(t_ref, out_ref):
    t = t_ref[...]                               # f32 tile, lane-dense

    # wrapped_call(t): gamma(t) with enforce_0_snr rescale (constants hoisted)
    g = _gamma(t)                                # single EUP cos per element
    if ENFORCE_0_SNR:
        g = (g - _SHIFT) * _SCALE                # scalar constants, pure VALU

    # forward(t): snr_scale factor  ->  g * s^2 / (1 - g + g*s^2)
    if SNR_SCALE != 1.0:
        denom = 1.0 - g + g * _S2
        g = g * (_S2 * pl.reciprocal(denom))     # exact reciprocal (EUP slot)

    out_ref[...] = g.astype(out_ref.dtype)


_LANES = 128
_NO_GRID_MAX_ELEMS = 1 << 20     # 1M f32 = 4 MiB: in+out fits v5e's 16 MiB scoped VMEM
_BLOCK_ROWS = 512                # gridded path: (512, 1024) f32 = 2 MiB per block
_BLOCK_COLS = 1024


def ddpm_schedule(t):
    """Pallas-backed equivalent of DDPMSchedule(enforce_0_snr, snr_scale).forward(t)."""
    orig_shape = t.shape
    flat = jnp.asarray(t, jnp.float32).reshape(-1)
    n = flat.shape[0]

    if n <= _NO_GRID_MAX_ELEMS:
        # Small/medium: whole array resident in VMEM, no per-step grid overhead.
        # Wide, lane-dense rows (multiple of 128, up to 8192) => unmasked vst.
        cols = _LANES * max(1, min(64, pl.cdiv(n, _LANES)))
        rows = pl.cdiv(n, cols)
        padded_n = rows * cols
        if padded_n != n:                        # skip pad when already aligned
            flat = jnp.pad(flat, (0, padded_n - n))
        x = flat.reshape(rows, cols)
        out = pl.pallas_call(
            ddpm_schedule_kernel,
            out_shape=jax.ShapeDtypeStruct((rows, cols), jnp.float32),
            in_specs=[pl.BlockSpec(memory_space=pltpu.MemorySpace.VMEM)],
            out_specs=pl.BlockSpec(memory_space=pltpu.MemorySpace.VMEM),
        )(x)
    else:
        # Large: pipelined 1-D grid over row blocks; Pallas double-buffers the
        # DMAs (2 MiB in + 2 MiB out per buffer => 8 MiB, under every
        # generation's default scoped-VMEM limit).  "parallel" lets v7x shard
        # the row axis across its 2 TensorCores; no-op on v5e/v6e.
        cols = _BLOCK_COLS
        rows = pl.cdiv(n, cols)
        padded_n = rows * cols
        if padded_n != n:
            flat = jnp.pad(flat, (0, padded_n - n))
        x = flat.reshape(rows, cols)
        out = pl.pallas_call(
            ddpm_schedule_kernel,
            out_shape=jax.ShapeDtypeStruct((rows, cols), jnp.float32),
            grid=(pl.cdiv(rows, _BLOCK_ROWS),),
            in_specs=[pl.BlockSpec((_BLOCK_ROWS, cols), lambda i: (i, 0))],
            out_specs=pl.BlockSpec((_BLOCK_ROWS, cols), lambda i: (i, 0)),
            compiler_params=pltpu.CompilerParams(
                dimension_semantics=("parallel",)),
        )(x)

    return out.reshape(-1)[:n].reshape(orig_shape)


def _ddpm_schedule_ref(t):
    """Pure-JAX reference mirroring the PyTorch forward (per-element gamma_0/gamma_T)."""
    t = jnp.asarray(t, jnp.float32)

    def wrapped(tt):
        g = _gamma(tt)
        if ENFORCE_0_SNR:
            g0 = _gamma(jnp.zeros_like(tt))
            gT = _gamma(jnp.ones_like(tt))
            g = (g - gT) * (g0 / (g0 - gT))
        return g

    g = wrapped(t)
    if SNR_SCALE != 1.0:
        s2 = SNR_SCALE ** 2
        return g * (s2 / (1.0 - g + g * s2))
    return g


if __name__ == "__main__":
    key = jax.random.PRNGKey(0)
    k1, k2 = jax.random.split(key)

    # batch of 8 timesteps in [0, 1], like DDPM training timesteps
    t1 = jax.random.uniform(k1, (8,), dtype=jnp.float32)
    out1 = jax.block_until_ready(ddpm_schedule(t1))
    ref1 = _ddpm_schedule_ref(t1)
    assert out1.shape == t1.shape and out1.dtype == jnp.float32
    assert jnp.allclose(out1, ref1, atol=1e-6, rtol=1e-5), (out1, ref1)

    # 2-D timestep tensor exercising the pad + reshape path (n not a multiple of 128)
    t2 = jax.random.uniform(k2, (2, 200), dtype=jnp.float32)
    out2 = jax.block_until_ready(ddpm_schedule(t2))
    ref2 = _ddpm_schedule_ref(t2)
    assert out2.shape == t2.shape and out2.dtype == jnp.float32
    assert jnp.allclose(out2, ref2, atol=1e-6, rtol=1e-5), (out2, ref2)

    print("KERNEL_OK")
</pallas_src>

<mosaic_0001>
module attributes {stable_mosaic.version = 11 : i64} {
  func.func @ddpm_schedule_kernel(%arg0: memref<1x128xf32, #tpu.memory_space<vmem>>, %arg1: memref<1x128xf32, #tpu.memory_space<vmem>>) attributes {dimension_semantics = [], scalar_prefetch = 0 : i64, scratch_operands = 0 : i64, tpu.core_type = #tpu.core_type<tc>} {
    %c0 = arith.constant 0 : index
    %c0_0 = arith.constant 0 : index
    %0 = vector.load %arg0[%c0, %c0_0] : memref<1x128xf32, #tpu.memory_space<vmem>>, vector<1x128xf32>
    %cst = arith.constant 1.57079637 : f32
    %1 = vector.broadcast %cst : f32 to vector<1x128xf32>
    %2 = arith.mulf %1, %0 : vector<1x128xf32>
    %3 = math.cos %2 : vector<1x128xf32>
    %4 = arith.mulf %3, %3 : vector<1x128xf32>
    %cst_1 = arith.constant 1.91068547E-15 : f32
    %5 = vector.broadcast %cst_1 : f32 to vector<1x128xf32>
    %6 = arith.subf %4, %5 : vector<1x128xf32>
    %cst_2 = arith.constant 1.000000e+00 : f32
    %7 = vector.broadcast %cst_2 : f32 to vector<1x128xf32>
    %8 = arith.mulf %6, %7 : vector<1x128xf32>
    %cst_3 = arith.constant 1.000000e+00 : f32
    %9 = vector.broadcast %cst_3 : f32 to vector<1x128xf32>
    %10 = arith.subf %9, %8 : vector<1x128xf32>
    %cst_4 = arith.constant 2.500000e-01 : f32
    %11 = vector.broadcast %cst_4 : f32 to vector<1x128xf32>
    %12 = arith.mulf %8, %11 : vector<1x128xf32>
    %13 = arith.addf %10, %12 : vector<1x128xf32>
    %14 = tpu.reciprocal %13 : vector<1x128xf32> -> vector<1x128xf32>
    %cst_5 = arith.constant 2.500000e-01 : f32
    %15 = vector.broadcast %cst_5 : f32 to vector<1x128xf32>
    %16 = arith.mulf %15, %14 : vector<1x128xf32>
    %17 = arith.mulf %8, %16 : vector<1x128xf32>
    %c0_6 = arith.constant 0 : index
    %c0_7 = arith.constant 0 : index
    %18 = vector.load %arg1[%c0_6, %c0_7] : memref<1x128xf32, #tpu.memory_space<vmem>>, vector<1x128xf32>
    tpu.vector_store %arg1[%c0_6, %c0_7], %17 {strides = array<i32>} : memref<1x128xf32, #tpu.memory_space<vmem>>, vector<1x128xf32>,
    return
  }
}

</mosaic_0001>

<llo_original>
// kernel: tpu_custom_call.1
$region0: #{tpu_custom_call.1}
  #allocation0 [shape = 'u32[]', space=smem, size = 0x4, offset = 0x4, fixed_abs, tag = 'smem constant byte address 0x4 - core index']
  #allocation1 [shape = 'u32[144,128]{1,0:T(1,128)}', space=vmem, size = 0x12000, scoped, tag = 'internal scratch']
  %s0 = inlined_call_operand.hbm [shape: f32[1,128], index: 0, kind: input, shape index: {}]
  %s1 = inlined_call_operand.hbm [shape: f32[1,128], index: 1, kind: output, shape index: {}]
  %s2 = sld [smem:[#allocation0]]
  $region18: #{tpu_custom_call.1} parent=0
    _
  %s4 = ssub.s32 1, %s2
  %s5 = scalar_select 0, %s4, %s2
  $region1: #{tpu_custom_call.1} parent=0
    #allocation2 [shape = 'u8[512]{0}', space=vmem, size = 0x400, scoped, tag = 'input window, operand 0, single buffered']
    #allocation3 [shape = 's32[1]{0}', space=sflag, size = 0x4, scoped, tag = 'scoped memory for tpu_custom_call.1']
    #allocation4 [shape = 's32[1]{0}', space=sflag, size = 0x4, scoped, tag = 'scoped memory for tpu_custom_call.1']
    #allocation5 [shape = 'u8[512]{0}', space=vmem, size = 0x400, scoped, tag = 'output window, operand 0, single buffered']
    %6 = vsyncpa [#allocation3], 0
    %7 = vsyncpa [#allocation4], 0
    // Predicated region
    $region2: #{tpu_custom_call.1} parent=1 // pred_check
      _
    $region3: #{tpu_custom_call.1} parent=1 // pred_check_branch
      %9 = sbr.rel (0) target = $region5
    $region4: #{tpu_custom_call.1} parent=1 // pred_region
      %s11 = ssub.s32 16, 16
      %12 = vsyncadd [#allocation3], %s11
      %s14 = sshll.u32 [#allocation2], 4
      %s15 = int_to_ptr.vmem [resolvable:$true] %s14
      %17 = dma.hbm_to_vmem [thread:$0]  %s0, 16, %s15, [#allocation3]
    $region5: #{tpu_custom_call.1} parent=1 // pred_fallthru
      _
    // Predicated region
    $region6: #{tpu_custom_call.1} parent=1 // pred_check
      _
    $region7: #{tpu_custom_call.1} parent=1 // pred_check_branch
      %19 = sbr.rel (0) target = $region9
    $region8: #{tpu_custom_call.1} parent=1 // pred_region
      %20 = dma.done [#allocation3], 16
    $region9: #{tpu_custom_call.1} parent=1 // pred_fallthru
      _
    %v21 = vld [vmem:[#allocation2] sm:$0x1]
    %v22 = vmul.f32 %v21, 1.5707964
    %v23 = vand.u32 2147483647, %v22
    %vm24 = vcmp.le.f32.partialorder %v23, 0.7853982
    %vm25 = vcmp.lt.s32.totalorder %v22, 0
    %v26 = vand.u32 %v22, 2139095040
    %v27 = vshrl.u32 %v26, 23
    %v28 = vsub.s32 %v27, 127
    %v29 = vand.u32 2147483647, %v22
    %v30 = vand.u32 %v29, 8388607
    %v31 = vor.u32 %v30, 8388608
    %v32 = vsub.s32 0, %v31
    %v33 = vadd.s32 %v28, 1
    %vm34 = vcmp.gt.s32.totalorder %v33, 0
    %v35 = vsel %vm34, %v33, 0
    %v36 = vshrl.u32 %v35, 5
    %v37 = vand.u32 %v35, 31
    %v38 = vsub.s32 32, %v37
    %v39 = vshrl.u32 683565275, %v38
    %v40 = vshll.u32 683565275, %v37
    %v41 = vshrl.u32 2475754826, %v38
    %v42 = vor.u32 %v40, %v41
    %v43 = vshll.u32 2475754826, %v37
    %v44 = vshrl.u32 2131351028, %v38
    %v45 = vor.u32 %v43, %v44
    %v46 = vshll.u32 2131351028, %v37
    %v47 = vshrl.u32 2102212464, %v38
    %v48 = vor.u32 %v46, %v47
    %v49 = vshll.u32 2102212464, %v37
    %v50 = vshrl.u32 920167782, %v38
    %v51 = vor.u32 %v49, %v50
    %v52 = vshll.u32 920167782, %v37
    %v53 = vshrl.u32 1326507024, %v38
    %v54 = vor.u32 %v52, %v53
    %vm55 = vcmp.lt.s32.totalorder %v36, 1
    %vm56 = vcmp.lt.s32.totalorder %v36, 2
    %vm57 = vcmp.lt.s32.totalorder %v36, 3
    %vm58 = vcmp.lt.s32.totalorder %v36, 4
    %v59 = vsel %vm55, %v39, %v42
    %v60 = vsel %vm58, %v48, 2102212464
    %v61 = vsel %vm57, %v45, %v60
    %v62 = vsel %vm56, %v59, %v61
    %v63 = vsel %vm55, %v42, %v45
    %v64 = vsel %vm58, %v51, 920167782
    %v65 = vsel %vm57, %v48, %v64
    %v66 = vsel %vm56, %v63, %v65
    %v67 = vsel %vm55, %v45, %v48
    %v68 = vsel %vm58, %v54, 1326507024
    %v69 = vsel %vm57, %v51, %v68
    %v70 = vsel %vm56, %v67, %v69
    %v71 = vshll.u32 %v31, 8
    %v72 = vmul.u32.u64.compose %v71, %v70
    %v73 = vextract.low.u32 %v72
    %v74 = vextract.high.u32 %v72
    %v75 = vmul.u32.u64.compose %v71, %v66
    %v76 = vextract.low.u32 %v75
    %v77 = vextract.high.u32 %v75
    %v78 = vmul.u32 %v71, %v62
    %v79 = vadd.s32 %v74, %v76
    %vm80 = vc.u32 %v74, %v76
    %v81 = vadd.s32 %v77, 1
    %v82 = vsel %vm80, %v81, %v77
    %v83 = vadd.s32 %v78, %v82
    %v84 = vadd.s32 %v83, 536870912
    %v85 = vshrl.u32 %v84, 30
    %v86 = vshll.u32 %v85, 30
    %v87 = vsub.s32 %v83, %v86
    %vm88 = vcmp.lt.s32.totalorder %v87, 0
    %v89 = vsub.s32 0, %v87
    %v90 = vsel %vm88, %v89, %v87
    %v91 = vclz %v90
    %v92 = vsub.s32 %v91, 2
    %vm93 = vcmp.gt.s32.totalorder 0, %v92
    %v94 = vsel %vm93, 0, %v92
    %v95 = vsub.s32 32, %v94
    %v96 = vshll.u32 %v87, %v94
    %v97 = vshrl.u32 %v79, %v95
    %v98 = vor.u32 %v96, %v97
    %v99 = vsub.s32 4294967266, %v94
    %v100 = vadd.s32 %v99, 127
    %v101 = vshll.u32 %v100, 23
    %v102 = vor.u32 4788187, %v101
    %v103 = vand.u32 2147483647, %v102
    %v105 = vcvt.s32.f32 %v98
    %v106 = vmul.f32 %v105, %v103
    %v107 = vxor.u32 %v106, 2147483648
    %v108 = vsel %vm25, %v107, %v106
    %v109 = vsub.s32 4, %v85
    %v110 = vsel %vm25, %v109, %v85
    %v111 = vsel %vm24, %v22, %v108
    %v112 = vsel %vm24, 0, %v110
    %v113 = vcosq.f32.pop %v111
    %v114 = vsinq.f32.pop %v111
    %vm115 = vweird.f32 %v22
    %v116 = vand.u32 %v112, 3
    %vm117 = vcmp.lt.s32.totalorder %v116, 2
    %vm118 = vcmp.eq.s32.totalorder %v116, 0
    %v119 = vxor.u32 %v114, 2147483648
    %v120 = vsel %vm118, %v113, %v119
    %vm121 = vcmp.eq.s32.totalorder %v116, 2
    %v122 = vxor.u32 %v113, 2147483648
    %v123 = vsel %vm121, %v122, %v114
    %v124 = vsel %vm117, %v120, %v123
    %v125 = vsel %vm115, nan, %v124
    %v126 = vmul.f32 %v125, %v125
    %v127 = vsub.f32 %v126, 1.9106855e-15
    %v128 = vsub.f32 1.0, %v127
    %v129 = vmul.f32 %v127, 0.25
    %v130 = vadd.f32 %v128, %v129
    %v131 = vrcp.pop %v130
    %v132 = vmul.f32 %v131, 0.25
    %v133 = vmul.f32 %v127, %v132
    %134 = vst [vmem:[#allocation5] sm:$0x1] %v133
    // Predicated region
    $region10: #{tpu_custom_call.1} parent=1 // pred_check
      _
    $region11: #{tpu_custom_call.1} parent=1 // pred_check_branch
      %136 = sbr.rel (0) target = $region13
    $region12: #{tpu_custom_call.1} parent=1 // pred_region
      %s138 = ssub.s32 16, 16
      %139 = vsyncadd [#allocation4], %s138
      %s141 = sshll.u32 [#allocation5], 4
      %s142 = int_to_ptr.vmem [resolvable:$true] %s141
      %144 = dma.vmem_to_hbm [thread:$0]  %s142, 16, %s1, [#allocation4]
    $region13: #{tpu_custom_call.1} parent=1 // pred_fallthru
      _
    // Predicated region
    $region14: #{tpu_custom_call.1} parent=1 // pred_check
      _
    $region15: #{tpu_custom_call.1} parent=1 // pred_check_branch
      %146 = sbr.rel (0) target = $region17
    $region16: #{tpu_custom_call.1} parent=1 // pred_region
      %147 = dma.done [#allocation4], 16
    $region17: #{tpu_custom_call.1} parent=1 // pred_fallthru
      _
    %148 = vsyncpa [#allocation3], 1
    %149 = vsyncpa [#allocation4], 1

</llo_original>
